<compile_context>
chip_gen: v6e
topology: v6e:2x2x1
jax: 0.10.0
libtpu: 0.0.40
codegen_flags: <defaults>
</compile_context>

<pallas_src>
import functools

import jax
import jax.numpy as jnp
from jax.experimental import pallas as pl
from jax.experimental.pallas import tpu as pltpu

_LANES = 128
_MAX_TILE_ROWS = 2048          # 2048 rows x 128 lanes x 4 B = 1 MiB / input block
_SMALL_N_THRESHOLD = 65536     # below this a fused XLA reduction beats kernel dispatch
_VMEM_LIMIT_BYTES = 32 * 1024 * 1024


def _value_loss_kernel(p_ref, t_ref, out_ref,
                       s_sqerr, s_p, s_t, s_pp, s_tt, s_pt,
                       m_p, m_t, x_p, x_t,
                       *, n_valid, has_tail):
    """Gridded streaming reductions over row tiles.

    p_ref, t_ref: VMEM f32[tile_r, 128] (pred / targ row tiles; last tile may
                  contain zero lane-padding and/or undefined ragged-block rows).
    out_ref     : SMEM f32[10]
      [0] sum((pred-targ)^2) [1] sum(pred) [2] sum(targ)
      [3] sum(pred^2)        [4] sum(targ^2) [5] sum(pred*targ)
      [6] min(pred) [7] min(targ) [8] max(pred) [9] max(targ)
    scratch     : ten VMEM f32[1, 128] per-lane accumulators.
    """
    i = pl.program_id(0)
    last = pl.num_programs(0) - 1
    tile_r, lanes = p_ref.shape

    @pl.when(i == 0)
    def _init():
        zero = jnp.zeros((1, lanes), jnp.float32)
        s_sqerr[...] = zero
        s_p[...] = zero
        s_t[...] = zero
        s_pp[...] = zero
        s_tt[...] = zero
        s_pt[...] = zero
        m_p[...] = jnp.full((1, lanes), jnp.inf, jnp.float32)
        m_t[...] = jnp.full((1, lanes), jnp.inf, jnp.float32)
        x_p[...] = jnp.full((1, lanes), -jnp.inf, jnp.float32)
        x_t[...] = jnp.full((1, lanes), -jnp.inf, jnp.float32)

    def _acc_sums(p, t):
        diff = p - t
        s_sqerr[...] += jnp.sum(diff * diff, axis=0, keepdims=True)
        s_p[...] += jnp.sum(p, axis=0, keepdims=True)
        s_t[...] += jnp.sum(t, axis=0, keepdims=True)
        s_pp[...] += jnp.sum(p * p, axis=0, keepdims=True)
        s_tt[...] += jnp.sum(t * t, axis=0, keepdims=True)
        s_pt[...] += jnp.sum(p * t, axis=0, keepdims=True)

    def _acc_minmax(p_min, t_min, p_max, t_max):
        m_p[...] = jnp.minimum(m_p[...], jnp.min(p_min, axis=0, keepdims=True))
        m_t[...] = jnp.minimum(m_t[...], jnp.min(t_min, axis=0, keepdims=True))
        x_p[...] = jnp.maximum(x_p[...], jnp.max(p_max, axis=0, keepdims=True))
        x_t[...] = jnp.maximum(x_t[...], jnp.max(t_max, axis=0, keepdims=True))

    def _plain_body():
        p = p_ref[...]
        t = t_ref[...]
        _acc_sums(p, t)
        _acc_minmax(p, t, p, t)

    if has_tail:
        # Interior tiles: fully valid data, no mask work at all.
        @pl.when(i != last)
        def _interior():
            _plain_body()

        # Only the last tile can contain lane zero-padding and/or undefined
        # ragged-block rows; rebuild the validity mask from iota against the
        # statically known element count and mask both sums and min/max.
        @pl.when(i == last)
        def _tail():
            p = p_ref[...]
            t = t_ref[...]
            row = jax.lax.broadcasted_iota(jnp.int32, (tile_r, lanes), 0)
            lane = jax.lax.broadcasted_iota(jnp.int32, (tile_r, lanes), 1)
            flat = (i * tile_r + row) * lanes + lane
            valid = flat < n_valid
            zero = jnp.float32(0.0)
            pos_inf = jnp.float32(jnp.inf)
            neg_inf = jnp.float32(-jnp.inf)
            _acc_sums(jnp.where(valid, p, zero), jnp.where(valid, t, zero))
            _acc_minmax(jnp.where(valid, p, pos_inf), jnp.where(valid, t, pos_inf),
                        jnp.where(valid, p, neg_inf), jnp.where(valid, t, neg_inf))
    else:
        _plain_body()

    @pl.when(i == last)
    def _finalize():
        out_ref[0] = jnp.sum(s_sqerr[...])
        out_ref[1] = jnp.sum(s_p[...])
        out_ref[2] = jnp.sum(s_t[...])
        out_ref[3] = jnp.sum(s_pp[...])
        out_ref[4] = jnp.sum(s_tt[...])
        out_ref[5] = jnp.sum(s_pt[...])
        out_ref[6] = jnp.min(m_p[...])
        out_ref[7] = jnp.min(m_t[...])
        out_ref[8] = jnp.max(x_p[...])
        out_ref[9] = jnp.max(x_t[...])


def _run_stats_pallas(pred, targ, *, n, tile_rows=None):
    """Reduce pred/targ to the 10-stat vector via one streaming Pallas pass."""
    p = pred.reshape(-1).astype(jnp.float32)
    t = targ.reshape(-1).astype(jnp.float32)

    rows = -(-n // _LANES)
    pad = rows * _LANES - n
    if pad:
        # Only non-lane-aligned n pays a pad copy; aligned n reshapes for free.
        p = jnp.pad(p, (0, pad))
        t = jnp.pad(t, (0, pad))
    p2 = p.reshape(rows, _LANES)
    t2 = t.reshape(rows, _LANES)

    if tile_rows is None:
        if rows <= _MAX_TILE_ROWS:
            tile_r = rows              # single full-extent block, no raggedness
        else:
            tile_r = _MAX_TILE_ROWS    # multiple of 8; last block may be ragged
    else:
        # Testing / tuning knob; must be a multiple of 8 (sublane constraint).
        if tile_rows % 8 != 0:
            raise ValueError("tile_rows must be a multiple of 8")
        tile_r = tile_rows

    num_tiles = -(-rows // tile_r)
    has_tail = (num_tiles * tile_r * _LANES != n)

    kernel = functools.partial(_value_loss_kernel, n_valid=n, has_tail=has_tail)
    return pl.pallas_call(
        kernel,
        out_shape=jax.ShapeDtypeStruct((10,), jnp.float32),
        grid=(num_tiles,),
        in_specs=[pl.BlockSpec((tile_r, _LANES), lambda i: (i, 0)),
                  pl.BlockSpec((tile_r, _LANES), lambda i: (i, 0))],
        out_specs=pl.BlockSpec(memory_space=pltpu.SMEM),
        scratch_shapes=[pltpu.VMEM((1, _LANES), jnp.float32)] * 10,
        compiler_params=pltpu.CompilerParams(
            dimension_semantics=("arbitrary",),
            vmem_limit_bytes=_VMEM_LIMIT_BYTES),
    )(p2, t2)


def _run_stats_jnp(pred, targ):
    """Small-n fast path: fused XLA reductions, same 10-stat layout."""
    p = pred.reshape(-1).astype(jnp.float32)
    t = targ.reshape(-1).astype(jnp.float32)
    diff = p - t
    return jnp.stack([
        jnp.sum(diff * diff), jnp.sum(p), jnp.sum(t),
        jnp.sum(p * p), jnp.sum(t * t), jnp.sum(p * t),
        jnp.min(p), jnp.min(t), jnp.max(p), jnp.max(t),
    ])


@functools.partial(jax.jit, static_argnames=("force_pallas", "tile_rows"))
def value_loss(pred, targ, *, force_pallas=False, tile_rows=None):
    """JAX/Pallas equivalent of ValueLoss(ValueL2).forward(pred, targ)."""
    assert pred.shape == targ.shape, "pred/targ must have the same shape"
    n = int(pred.size)
    batch = int(pred.shape[0])

    if force_pallas or n >= _SMALL_N_THRESHOLD:
        stats = _run_stats_pallas(pred, targ, n=n, tile_rows=tile_rows)
    else:
        stats = _run_stats_jnp(pred, targ)

    nf = jnp.float32(n)
    loss = stats[0] / nf                      # mean of elementwise squared error
    mean_p = stats[1] / nf
    mean_t = stats[2] / nf

    if batch > 1:
        # Pearson correlation from raw f32 moments (np.corrcoef centers first).
        cov_pt = stats[5] / nf - mean_p * mean_t
        var_p = jnp.maximum(stats[3] / nf - mean_p * mean_p, 0.0)
        var_t = jnp.maximum(stats[4] / nf - mean_t * mean_t, 0.0)
        denom = var_p * var_t
        corr = jnp.where(denom > 0,
                         cov_pt / jnp.sqrt(denom),
                         jnp.float32(jnp.nan))
    else:
        corr = jnp.float32(jnp.nan)

    info = {
        "mean_pred": mean_p,
        "mean_targ": mean_t,
        "min_pred": stats[6],
        "min_targ": stats[7],
        "max_pred": stats[8],
        "max_targ": stats[9],
        "corr": corr,
    }
    return loss, info


if __name__ == "__main__":
    key = jax.random.PRNGKey(0)
    k1, k2, k3, k4 = jax.random.split(key, 4)

    def ref_forward(p, t):
        ref_loss = jnp.mean((p - t) ** 2)
        p1 = p.squeeze()
        t1 = t.squeeze()
        ref_corr = (jnp.mean(p1 * t1) - jnp.mean(p1) * jnp.mean(t1)) / (
            jnp.std(p1) * jnp.std(t1))
        return ref_loss, ref_corr

    # Value predictions / targets: [batch, 1] as produced by the value head.
    B = 8
    pred = jax.random.normal(k1, (B, 1), dtype=jnp.float32)
    targ = jax.random.normal(k2, (B, 1), dtype=jnp.float32)

    # Force the Pallas path so the kernel is exercised (n=8 would otherwise
    # take the fused-jnp small-n fast path).
    loss, info = value_loss(pred, targ, force_pallas=True)
    jax.block_until_ready(loss)
    jax.tree_util.tree_map(jax.block_until_ready, info)

    ref_loss, ref_corr = ref_forward(pred, targ)
    assert jnp.allclose(loss, ref_loss, atol=1e-5, rtol=1e-5)
    assert jnp.allclose(info["mean_pred"], jnp.mean(pred), atol=1e-6)
    assert jnp.allclose(info["mean_targ"], jnp.mean(targ), atol=1e-6)
    assert jnp.allclose(info["min_pred"], jnp.min(pred), atol=1e-6)
    assert jnp.allclose(info["min_targ"], jnp.min(targ), atol=1e-6)
    assert jnp.allclose(info["max_pred"], jnp.max(pred), atol=1e-6)
    assert jnp.allclose(info["max_targ"], jnp.max(targ), atol=1e-6)
    assert jnp.allclose(info["corr"], ref_corr, atol=1e-4)

    # Multi-tile + ragged-tail exercise: n = 2500 (not lane-aligned) with small
    # forced tiles -> 2 plain interior tiles + 1 masked ragged last tile.
    B2 = 2500
    pred2 = jax.random.normal(k3, (B2, 1), dtype=jnp.float32)
    targ2 = jax.random.normal(k4, (B2, 1), dtype=jnp.float32)
    loss2, info2 = value_loss(pred2, targ2, force_pallas=True, tile_rows=8)
    jax.block_until_ready(loss2)
    ref_loss2, ref_corr2 = ref_forward(pred2, targ2)
    assert jnp.allclose(loss2, ref_loss2, rtol=1e-4, atol=1e-5)
    assert jnp.allclose(info2["mean_pred"], jnp.mean(pred2), rtol=1e-4, atol=1e-5)
    assert jnp.allclose(info2["mean_targ"], jnp.mean(targ2), rtol=1e-4, atol=1e-5)
    assert jnp.allclose(info2["min_pred"], jnp.min(pred2), atol=1e-6)
    assert jnp.allclose(info2["min_targ"], jnp.min(targ2), atol=1e-6)
    assert jnp.allclose(info2["max_pred"], jnp.max(pred2), atol=1e-6)
    assert jnp.allclose(info2["max_targ"], jnp.max(targ2), atol=1e-6)
    assert jnp.allclose(info2["corr"], ref_corr2, atol=1e-3)

    # Small-n fast path (auto dispatch) must agree with the Pallas path.
    loss_fast, info_fast = value_loss(pred, targ)
    jax.block_until_ready(loss_fast)
    assert jnp.allclose(loss, loss_fast, atol=1e-6)
    assert jnp.allclose(info["corr"], info_fast["corr"], atol=1e-5)
    assert jnp.allclose(info["min_pred"], info_fast["min_pred"], atol=1e-6)

    # Batch-of-one: corr must be NaN (matches np.NaN in the reference module).
    loss1, info1 = value_loss(pred[:1], targ[:1], force_pallas=True)
    jax.block_until_ready(loss1)
    assert jnp.isnan(info1["corr"])
    assert jnp.allclose(loss1, (pred[0, 0] - targ[0, 0]) ** 2, atol=1e-6)

    print("KERNEL_OK")
</pallas_src>

<mosaic_0001>
module attributes {stable_mosaic.version = 11 : i64} {
  func.func @_value_loss_kernel(%arg0: i32, %arg1: memref<1x128xf32, #tpu.memory_space<vmem>>, %arg2: memref<1x128xf32, #tpu.memory_space<vmem>>, %arg3: memref<10xf32, #tpu.memory_space<smem>>, %arg4: memref<1x128xf32, #tpu.memory_space<vmem>>, %arg5: memref<1x128xf32, #tpu.memory_space<vmem>>, %arg6: memref<1x128xf32, #tpu.memory_space<vmem>>, %arg7: memref<1x128xf32, #tpu.memory_space<vmem>>, %arg8: memref<1x128xf32, #tpu.memory_space<vmem>>, %arg9: memref<1x128xf32, #tpu.memory_space<vmem>>, %arg10: memref<1x128xf32, #tpu.memory_space<vmem>>, %arg11: memref<1x128xf32, #tpu.memory_space<vmem>>, %arg12: memref<1x128xf32, #tpu.memory_space<vmem>>, %arg13: memref<1x128xf32, #tpu.memory_space<vmem>>) attributes {dimension_semantics = [#tpu.dimension_semantics<arbitrary>], iteration_bounds = array<i64: 1>, scalar_prefetch = 0 : i64, scratch_operands = 10 : i64, tpu.core_type = #tpu.core_type<tc>, window_params = [{transform_indices = @transform_0, window_bounds = array<i64: 1, 128>}, {transform_indices = @transform_1, window_bounds = array<i64: 1, 128>}, {transform_indices = @transform_2, window_bounds = array<i64: 10>}]} {
    %c0_i32 = arith.constant 0 : i32
    %0 = arith.cmpi eq, %arg0, %c0_i32 : i32
    %1 = arith.extui %0 : i1 to i32
    %c0_i32_0 = arith.constant 0 : i32
    %2 = arith.cmpi ne, %1, %c0_i32_0 : i32
    scf.if %2 {
      %cst = arith.constant 0.000000e+00 : f32
      %12 = vector.broadcast %cst : f32 to vector<1x128xf32>
      %c0 = arith.constant 0 : index
      %c0_7 = arith.constant 0 : index
      %13 = vector.load %arg4[%c0, %c0_7] : memref<1x128xf32, #tpu.memory_space<vmem>>, vector<1x128xf32>
      tpu.vector_store %arg4[%c0, %c0_7], %12 {strides = array<i32>} : memref<1x128xf32, #tpu.memory_space<vmem>>, vector<1x128xf32>,
      %c0_8 = arith.constant 0 : index
      %c0_9 = arith.constant 0 : index
      %14 = vector.load %arg5[%c0_8, %c0_9] : memref<1x128xf32, #tpu.memory_space<vmem>>, vector<1x128xf32>
      tpu.vector_store %arg5[%c0_8, %c0_9], %12 {strides = array<i32>} : memref<1x128xf32, #tpu.memory_space<vmem>>, vector<1x128xf32>,
      %c0_10 = arith.constant 0 : index
      %c0_11 = arith.constant 0 : index
      %15 = vector.load %arg6[%c0_10, %c0_11] : memref<1x128xf32, #tpu.memory_space<vmem>>, vector<1x128xf32>
      tpu.vector_store %arg6[%c0_10, %c0_11], %12 {strides = array<i32>} : memref<1x128xf32, #tpu.memory_space<vmem>>, vector<1x128xf32>,
      %c0_12 = arith.constant 0 : index
      %c0_13 = arith.constant 0 : index
      %16 = vector.load %arg7[%c0_12, %c0_13] : memref<1x128xf32, #tpu.memory_space<vmem>>, vector<1x128xf32>
      tpu.vector_store %arg7[%c0_12, %c0_13], %12 {strides = array<i32>} : memref<1x128xf32, #tpu.memory_space<vmem>>, vector<1x128xf32>,
      %c0_14 = arith.constant 0 : index
      %c0_15 = arith.constant 0 : index
      %17 = vector.load %arg8[%c0_14, %c0_15] : memref<1x128xf32, #tpu.memory_space<vmem>>, vector<1x128xf32>
      tpu.vector_store %arg8[%c0_14, %c0_15], %12 {strides = array<i32>} : memref<1x128xf32, #tpu.memory_space<vmem>>, vector<1x128xf32>,
      %c0_16 = arith.constant 0 : index
      %c0_17 = arith.constant 0 : index
      %18 = vector.load %arg9[%c0_16, %c0_17] : memref<1x128xf32, #tpu.memory_space<vmem>>, vector<1x128xf32>
      tpu.vector_store %arg9[%c0_16, %c0_17], %12 {strides = array<i32>} : memref<1x128xf32, #tpu.memory_space<vmem>>, vector<1x128xf32>,
      %cst_18 = arith.constant 0x7F800000 : f32
      %19 = vector.broadcast %cst_18 : f32 to vector<1x128xf32>
      %c0_19 = arith.constant 0 : index
      %c0_20 = arith.constant 0 : index
      %20 = vector.load %arg10[%c0_19, %c0_20] : memref<1x128xf32, #tpu.memory_space<vmem>>, vector<1x128xf32>
      tpu.vector_store %arg10[%c0_19, %c0_20], %19 {strides = array<i32>} : memref<1x128xf32, #tpu.memory_space<vmem>>, vector<1x128xf32>,
      %cst_21 = arith.constant 0x7F800000 : f32
      %21 = vector.broadcast %cst_21 : f32 to vector<1x128xf32>
      %c0_22 = arith.constant 0 : index
      %c0_23 = arith.constant 0 : index
      %22 = vector.load %arg11[%c0_22, %c0_23] : memref<1x128xf32, #tpu.memory_space<vmem>>, vector<1x128xf32>
      tpu.vector_store %arg11[%c0_22, %c0_23], %21 {strides = array<i32>} : memref<1x128xf32, #tpu.memory_space<vmem>>, vector<1x128xf32>,
      %cst_24 = arith.constant 0xFF800000 : f32
      %23 = vector.broadcast %cst_24 : f32 to vector<1x128xf32>
      %c0_25 = arith.constant 0 : index
      %c0_26 = arith.constant 0 : index
      %24 = vector.load %arg12[%c0_25, %c0_26] : memref<1x128xf32, #tpu.memory_space<vmem>>, vector<1x128xf32>
      tpu.vector_store %arg12[%c0_25, %c0_26], %23 {strides = array<i32>} : memref<1x128xf32, #tpu.memory_space<vmem>>, vector<1x128xf32>,
      %cst_27 = arith.constant 0xFF800000 : f32
      %25 = vector.broadcast %cst_27 : f32 to vector<1x128xf32>
      %c0_28 = arith.constant 0 : index
      %c0_29 = arith.constant 0 : index
      %26 = vector.load %arg13[%c0_28, %c0_29] : memref<1x128xf32, #tpu.memory_space<vmem>>, vector<1x128xf32>
      tpu.vector_store %arg13[%c0_28, %c0_29], %25 {strides = array<i32>} : memref<1x128xf32, #tpu.memory_space<vmem>>, vector<1x128xf32>,
    } else {
    }
    %c0_i32_1 = arith.constant 0 : i32
    %3 = arith.cmpi ne, %arg0, %c0_i32_1 : i32
    %4 = arith.extui %3 : i1 to i32
    %c0_i32_2 = arith.constant 0 : i32
    %5 = arith.cmpi ne, %4, %c0_i32_2 : i32
    scf.if %5 {
      %c0 = arith.constant 0 : index
      %c0_7 = arith.constant 0 : index
      %12 = vector.load %arg1[%c0, %c0_7] : memref<1x128xf32, #tpu.memory_space<vmem>>, vector<1x128xf32>
      %c0_8 = arith.constant 0 : index
      %c0_9 = arith.constant 0 : index
      %13 = vector.load %arg2[%c0_8, %c0_9] : memref<1x128xf32, #tpu.memory_space<vmem>>, vector<1x128xf32>
      %14 = arith.subf %12, %13 : vector<1x128xf32>
      %c0_10 = arith.constant 0 : index
      %c0_11 = arith.constant 0 : index
      %15 = vector.load %arg4[%c0_10, %c0_11] : memref<1x128xf32, #tpu.memory_space<vmem>>, vector<1x128xf32>
      %16 = arith.mulf %14, %14 : vector<1x128xf32>
      %cst = arith.constant dense<0.000000e+00> : vector<128xf32>
      %17 = vector.multi_reduction <add>, %16, %cst [0] : vector<1x128xf32> to vector<128xf32>
      %18 = vector.shape_cast %17 : vector<128xf32> to vector<1x128xf32>
      %19 = arith.addf %15, %18 : vector<1x128xf32>
      %c0_12 = arith.constant 0 : index
      %c0_13 = arith.constant 0 : index
      %20 = vector.load %arg4[%c0_12, %c0_13] : memref<1x128xf32, #tpu.memory_space<vmem>>, vector<1x128xf32>
      tpu.vector_store %arg4[%c0_12, %c0_13], %19 {strides = array<i32>} : memref<1x128xf32, #tpu.memory_space<vmem>>, vector<1x128xf32>,
      %c0_14 = arith.constant 0 : index
      %c0_15 = arith.constant 0 : index
      %21 = vector.load %arg5[%c0_14, %c0_15] : memref<1x128xf32, #tpu.memory_space<vmem>>, vector<1x128xf32>
      %cst_16 = arith.constant dense<0.000000e+00> : vector<128xf32>
      %22 = vector.multi_reduction <add>, %12, %cst_16 [0] : vector<1x128xf32> to vector<128xf32>
      %23 = vector.shape_cast %22 : vector<128xf32> to vector<1x128xf32>
      %24 = arith.addf %21, %23 : vector<1x128xf32>
      %c0_17 = arith.constant 0 : index
      %c0_18 = arith.constant 0 : index
      %25 = vector.load %arg5[%c0_17, %c0_18] : memref<1x128xf32, #tpu.memory_space<vmem>>, vector<1x128xf32>
      tpu.vector_store %arg5[%c0_17, %c0_18], %24 {strides = array<i32>} : memref<1x128xf32, #tpu.memory_space<vmem>>, vector<1x128xf32>,
      %c0_19 = arith.constant 0 : index
      %c0_20 = arith.constant 0 : index
      %26 = vector.load %arg6[%c0_19, %c0_20] : memref<1x128xf32, #tpu.memory_space<vmem>>, vector<1x128xf32>
      %cst_21 = arith.constant dense<0.000000e+00> : vector<128xf32>
      %27 = vector.multi_reduction <add>, %13, %cst_21 [0] : vector<1x128xf32> to vector<128xf32>
      %28 = vector.shape_cast %27 : vector<128xf32> to vector<1x128xf32>
      %29 = arith.addf %26, %28 : vector<1x128xf32>
      %c0_22 = arith.constant 0 : index
      %c0_23 = arith.constant 0 : index
      %30 = vector.load %arg6[%c0_22, %c0_23] : memref<1x128xf32, #tpu.memory_space<vmem>>, vector<1x128xf32>
      tpu.vector_store %arg6[%c0_22, %c0_23], %29 {strides = array<i32>} : memref<1x128xf32, #tpu.memory_space<vmem>>, vector<1x128xf32>,
      %c0_24 = arith.constant 0 : index
      %c0_25 = arith.constant 0 : index
      %31 = vector.load %arg7[%c0_24, %c0_25] : memref<1x128xf32, #tpu.memory_space<vmem>>, vector<1x128xf32>
      %32 = arith.mulf %12, %12 : vector<1x128xf32>
      %cst_26 = arith.constant dense<0.000000e+00> : vector<128xf32>
      %33 = vector.multi_reduction <add>, %32, %cst_26 [0] : vector<1x128xf32> to vector<128xf32>
      %34 = vector.shape_cast %33 : vector<128xf32> to vector<1x128xf32>
      %35 = arith.addf %31, %34 : vector<1x128xf32>
      %c0_27 = arith.constant 0 : index
      %c0_28 = arith.constant 0 : index
      %36 = vector.load %arg7[%c0_27, %c0_28] : memref<1x128xf32, #tpu.memory_space<vmem>>, vector<1x128xf32>
      tpu.vector_store %arg7[%c0_27, %c0_28], %35 {strides = array<i32>} : memref<1x128xf32, #tpu.memory_space<vmem>>, vector<1x128xf32>,
      %c0_29 = arith.constant 0 : index
      %c0_30 = arith.constant 0 : index
      %37 = vector.load %arg8[%c0_29, %c0_30] : memref<1x128xf32, #tpu.memory_space<vmem>>, vector<1x128xf32>
      %38 = arith.mulf %13, %13 : vector<1x128xf32>
      %cst_31 = arith.constant dense<0.000000e+00> : vector<128xf32>
      %39 = vector.multi_reduction <add>, %38, %cst_31 [0] : vector<1x128xf32> to vector<128xf32>
      %40 = vector.shape_cast %39 : vector<128xf32> to vector<1x128xf32>
      %41 = arith.addf %37, %40 : vector<1x128xf32>
      %c0_32 = arith.constant 0 : index
      %c0_33 = arith.constant 0 : index
      %42 = vector.load %arg8[%c0_32, %c0_33] : memref<1x128xf32, #tpu.memory_space<vmem>>, vector<1x128xf32>
      tpu.vector_store %arg8[%c0_32, %c0_33], %41 {strides = array<i32>} : memref<1x128xf32, #tpu.memory_space<vmem>>, vector<1x128xf32>,
      %c0_34 = arith.constant 0 : index
      %c0_35 = arith.constant 0 : index
      %43 = vector.load %arg9[%c0_34, %c0_35] : memref<1x128xf32, #tpu.memory_space<vmem>>, vector<1x128xf32>
      %44 = arith.mulf %12, %13 : vector<1x128xf32>
      %cst_36 = arith.constant dense<0.000000e+00> : vector<128xf32>
      %45 = vector.multi_reduction <add>, %44, %cst_36 [0] : vector<1x128xf32> to vector<128xf32>
      %46 = vector.shape_cast %45 : vector<128xf32> to vector<1x128xf32>
      %47 = arith.addf %43, %46 : vector<1x128xf32>
      %c0_37 = arith.constant 0 : index
      %c0_38 = arith.constant 0 : index
      %48 = vector.load %arg9[%c0_37, %c0_38] : memref<1x128xf32, #tpu.memory_space<vmem>>, vector<1x128xf32>
      tpu.vector_store %arg9[%c0_37, %c0_38], %47 {strides = array<i32>} : memref<1x128xf32, #tpu.memory_space<vmem>>, vector<1x128xf32>,
      %c0_39 = arith.constant 0 : index
      %c0_40 = arith.constant 0 : index
      %49 = vector.load %arg10[%c0_39, %c0_40] : memref<1x128xf32, #tpu.memory_space<vmem>>, vector<1x128xf32>
      %cst_41 = arith.constant dense<0x7F800000> : vector<128xf32>
      %50 = vector.multi_reduction <minimumf>, %12, %cst_41 [0] : vector<1x128xf32> to vector<128xf32>
      %51 = vector.shape_cast %50 : vector<128xf32> to vector<1x128xf32>
      %52 = arith.minimumf %49, %51 : vector<1x128xf32>
      %c0_42 = arith.constant 0 : index
      %c0_43 = arith.constant 0 : index
      %53 = vector.load %arg10[%c0_42, %c0_43] : memref<1x128xf32, #tpu.memory_space<vmem>>, vector<1x128xf32>
      tpu.vector_store %arg10[%c0_42, %c0_43], %52 {strides = array<i32>} : memref<1x128xf32, #tpu.memory_space<vmem>>, vector<1x128xf32>,
      %c0_44 = arith.constant 0 : index
      %c0_45 = arith.constant 0 : index
      %54 = vector.load %arg11[%c0_44, %c0_45] : memref<1x128xf32, #tpu.memory_space<vmem>>, vector<1x128xf32>
      %cst_46 = arith.constant dense<0x7F800000> : vector<128xf32>
      %55 = vector.multi_reduction <minimumf>, %13, %cst_46 [0] : vector<1x128xf32> to vector<128xf32>
      %56 = vector.shape_cast %55 : vector<128xf32> to vector<1x128xf32>
      %57 = arith.minimumf %54, %56 : vector<1x128xf32>
      %c0_47 = arith.constant 0 : index
      %c0_48 = arith.constant 0 : index
      %58 = vector.load %arg11[%c0_47, %c0_48] : memref<1x128xf32, #tpu.memory_space<vmem>>, vector<1x128xf32>
      tpu.vector_store %arg11[%c0_47, %c0_48], %57 {strides = array<i32>} : memref<1x128xf32, #tpu.memory_space<vmem>>, vector<1x128xf32>,
      %c0_49 = arith.constant 0 : index
      %c0_50 = arith.constant 0 : index
      %59 = vector.load %arg12[%c0_49, %c0_50] : memref<1x128xf32, #tpu.memory_space<vmem>>, vector<1x128xf32>
      %cst_51 = arith.constant dense<0xFF800000> : vector<128xf32>
      %60 = vector.multi_reduction <maximumf>, %12, %cst_51 [0] : vector<1x128xf32> to vector<128xf32>
      %61 = vector.shape_cast %60 : vector<128xf32> to vector<1x128xf32>
      %62 = arith.maximumf %59, %61 : vector<1x128xf32>
      %c0_52 = arith.constant 0 : index
      %c0_53 = arith.constant 0 : index
      %63 = vector.load %arg12[%c0_52, %c0_53] : memref<1x128xf32, #tpu.memory_space<vmem>>, vector<1x128xf32>
      tpu.vector_store %arg12[%c0_52, %c0_53], %62 {strides = array<i32>} : memref<1x128xf32, #tpu.memory_space<vmem>>, vector<1x128xf32>,
      %c0_54 = arith.constant 0 : index
      %c0_55 = arith.constant 0 : index
      %64 = vector.load %arg13[%c0_54, %c0_55] : memref<1x128xf32, #tpu.memory_space<vmem>>, vector<1x128xf32>
      %cst_56 = arith.constant dense<0xFF800000> : vector<128xf32>
      %65 = vector.multi_reduction <maximumf>, %13, %cst_56 [0] : vector<1x128xf32> to vector<128xf32>
      %66 = vector.shape_cast %65 : vector<128xf32> to vector<1x128xf32>
      %67 = arith.maximumf %64, %66 : vector<1x128xf32>
      %c0_57 = arith.constant 0 : index
      %c0_58 = arith.constant 0 : index
      %68 = vector.load %arg13[%c0_57, %c0_58] : memref<1x128xf32, #tpu.memory_space<vmem>>, vector<1x128xf32>
      tpu.vector_store %arg13[%c0_57, %c0_58], %67 {strides = array<i32>} : memref<1x128xf32, #tpu.memory_space<vmem>>, vector<1x128xf32>,
    } else {
    }
    %c0_i32_3 = arith.constant 0 : i32
    %6 = arith.cmpi eq, %arg0, %c0_i32_3 : i32
    %7 = arith.extui %6 : i1 to i32
    %c0_i32_4 = arith.constant 0 : i32
    %8 = arith.cmpi ne, %7, %c0_i32_4 : i32
    scf.if %8 {
      %c0 = arith.constant 0 : index
      %c0_7 = arith.constant 0 : index
      %12 = vector.load %arg1[%c0, %c0_7] : memref<1x128xf32, #tpu.memory_space<vmem>>, vector<1x128xf32>
      %c0_8 = arith.constant 0 : index
      %c0_9 = arith.constant 0 : index
      %13 = vector.load %arg2[%c0_8, %c0_9] : memref<1x128xf32, #tpu.memory_space<vmem>>, vector<1x128xf32>
      %14 = tpu.iota {dimensions = array<i32: 0>} : vector<1x128xi32>
      %15 = tpu.iota {dimensions = array<i32: 1>} : vector<1x128xi32>
      %c1_i32 = arith.constant 1 : i32
      %16 = arith.muli %arg0, %c1_i32 : i32
      %17 = vector.broadcast %16 : i32 to vector<1x128xi32>
      %18 = arith.addi %17, %14 : vector<1x128xi32>
      %c128_i32 = arith.constant 128 : i32
      %19 = vector.broadcast %c128_i32 : i32 to vector<1x128xi32>
      %20 = arith.muli %18, %19 : vector<1x128xi32>
      %21 = arith.addi %20, %15 : vector<1x128xi32>
      %c8_i32 = arith.constant 8 : i32
      %22 = vector.broadcast %c8_i32 : i32 to vector<1x128xi32>
      %23 = arith.cmpi slt, %21, %22 : vector<1x128xi32>
      %cst = arith.constant 0.000000e+00 : f32
      %24 = vector.broadcast %cst : f32 to vector<1x128xf32>
      %25 = arith.select %23, %12, %24 : vector<1x128xi1>, vector<1x128xf32>
      %cst_10 = arith.constant 0.000000e+00 : f32
      %26 = vector.broadcast %cst_10 : f32 to vector<1x128xf32>
      %27 = arith.select %23, %13, %26 : vector<1x128xi1>, vector<1x128xf32>
      %28 = arith.subf %25, %27 : vector<1x128xf32>
      %c0_11 = arith.constant 0 : index
      %c0_12 = arith.constant 0 : index
      %29 = vector.load %arg4[%c0_11, %c0_12] : memref<1x128xf32, #tpu.memory_space<vmem>>, vector<1x128xf32>
      %30 = arith.mulf %28, %28 : vector<1x128xf32>
      %cst_13 = arith.constant dense<0.000000e+00> : vector<128xf32>
      %31 = vector.multi_reduction <add>, %30, %cst_13 [0] : vector<1x128xf32> to vector<128xf32>
      %32 = vector.shape_cast %31 : vector<128xf32> to vector<1x128xf32>
      %33 = arith.addf %29, %32 : vector<1x128xf32>
      %c0_14 = arith.constant 0 : index
      %c0_15 = arith.constant 0 : index
      %34 = vector.load %arg4[%c0_14, %c0_15] : memref<1x128xf32, #tpu.memory_space<vmem>>, vector<1x128xf32>
      tpu.vector_store %arg4[%c0_14, %c0_15], %33 {strides = array<i32>} : memref<1x128xf32, #tpu.memory_space<vmem>>, vector<1x128xf32>,
      %c0_16 = arith.constant 0 : index
      %c0_17 = arith.constant 0 : index
      %35 = vector.load %arg5[%c0_16, %c0_17] : memref<1x128xf32, #tpu.memory_space<vmem>>, vector<1x128xf32>
      %cst_18 = arith.constant dense<0.000000e+00> : vector<128xf32>
      %36 = vector.multi_reduction <add>, %25, %cst_18 [0] : vector<1x128xf32> to vector<128xf32>
      %37 = vector.shape_cast %36 : vector<128xf32> to vector<1x128xf32>
      %38 = arith.addf %35, %37 : vector<1x128xf32>
      %c0_19 = arith.constant 0 : index
      %c0_20 = arith.constant 0 : index
      %39 = vector.load %arg5[%c0_19, %c0_20] : memref<1x128xf32, #tpu.memory_space<vmem>>, vector<1x128xf32>
      tpu.vector_store %arg5[%c0_19, %c0_20], %38 {strides = array<i32>} : memref<1x128xf32, #tpu.memory_space<vmem>>, vector<1x128xf32>,
      %c0_21 = arith.constant 0 : index
      %c0_22 = arith.constant 0 : index
      %40 = vector.load %arg6[%c0_21, %c0_22] : memref<1x128xf32, #tpu.memory_space<vmem>>, vector<1x128xf32>
      %cst_23 = arith.constant dense<0.000000e+00> : vector<128xf32>
      %41 = vector.multi_reduction <add>, %27, %cst_23 [0] : vector<1x128xf32> to vector<128xf32>
      %42 = vector.shape_cast %41 : vector<128xf32> to vector<1x128xf32>
      %43 = arith.addf %40, %42 : vector<1x128xf32>
      %c0_24 = arith.constant 0 : index
      %c0_25 = arith.constant 0 : index
      %44 = vector.load %arg6[%c0_24, %c0_25] : memref<1x128xf32, #tpu.memory_space<vmem>>, vector<1x128xf32>
      tpu.vector_store %arg6[%c0_24, %c0_25], %43 {strides = array<i32>} : memref<1x128xf32, #tpu.memory_space<vmem>>, vector<1x128xf32>,
      %c0_26 = arith.constant 0 : index
      %c0_27 = arith.constant 0 : index
      %45 = vector.load %arg7[%c0_26, %c0_27] : memref<1x128xf32, #tpu.memory_space<vmem>>, vector<1x128xf32>
      %46 = arith.mulf %25, %25 : vector<1x128xf32>
      %cst_28 = arith.constant dense<0.000000e+00> : vector<128xf32>
      %47 = vector.multi_reduction <add>, %46, %cst_28 [0] : vector<1x128xf32> to vector<128xf32>
      %48 = vector.shape_cast %47 : vector<128xf32> to vector<1x128xf32>
      %49 = arith.addf %45, %48 : vector<1x128xf32>
      %c0_29 = arith.constant 0 : index
      %c0_30 = arith.constant 0 : index
      %50 = vector.load %arg7[%c0_29, %c0_30] : memref<1x128xf32, #tpu.memory_space<vmem>>, vector<1x128xf32>
      tpu.vector_store %arg7[%c0_29, %c0_30], %49 {strides = array<i32>} : memref<1x128xf32, #tpu.memory_space<vmem>>, vector<1x128xf32>,
      %c0_31 = arith.constant 0 : index
      %c0_32 = arith.constant 0 : index
      %51 = vector.load %arg8[%c0_31, %c0_32] : memref<1x128xf32, #tpu.memory_space<vmem>>, vector<1x128xf32>
      %52 = arith.mulf %27, %27 : vector<1x128xf32>
      %cst_33 = arith.constant dense<0.000000e+00> : vector<128xf32>
      %53 = vector.multi_reduction <add>, %52, %cst_33 [0] : vector<1x128xf32> to vector<128xf32>
      %54 = vector.shape_cast %53 : vector<128xf32> to vector<1x128xf32>
      %55 = arith.addf %51, %54 : vector<1x128xf32>
      %c0_34 = arith.constant 0 : index
      %c0_35 = arith.constant 0 : index
      %56 = vector.load %arg8[%c0_34, %c0_35] : memref<1x128xf32, #tpu.memory_space<vmem>>, vector<1x128xf32>
      tpu.vector_store %arg8[%c0_34, %c0_35], %55 {strides = array<i32>} : memref<1x128xf32, #tpu.memory_space<vmem>>, vector<1x128xf32>,
      %c0_36 = arith.constant 0 : index
      %c0_37 = arith.constant 0 : index
      %57 = vector.load %arg9[%c0_36, %c0_37] : memref<1x128xf32, #tpu.memory_space<vmem>>, vector<1x128xf32>
      %58 = arith.mulf %25, %27 : vector<1x128xf32>
      %cst_38 = arith.constant dense<0.000000e+00> : vector<128xf32>
      %59 = vector.multi_reduction <add>, %58, %cst_38 [0] : vector<1x128xf32> to vector<128xf32>
      %60 = vector.shape_cast %59 : vector<128xf32> to vector<1x128xf32>
      %61 = arith.addf %57, %60 : vector<1x128xf32>
      %c0_39 = arith.constant 0 : index
      %c0_40 = arith.constant 0 : index
      %62 = vector.load %arg9[%c0_39, %c0_40] : memref<1x128xf32, #tpu.memory_space<vmem>>, vector<1x128xf32>
      tpu.vector_store %arg9[%c0_39, %c0_40], %61 {strides = array<i32>} : memref<1x128xf32, #tpu.memory_space<vmem>>, vector<1x128xf32>,
      %cst_41 = arith.constant 0x7F800000 : f32
      %63 = vector.broadcast %cst_41 : f32 to vector<1x128xf32>
      %64 = arith.select %23, %12, %63 : vector<1x128xi1>, vector<1x128xf32>
      %cst_42 = arith.constant 0x7F800000 : f32
      %65 = vector.broadcast %cst_42 : f32 to vector<1x128xf32>
      %66 = arith.select %23, %13, %65 : vector<1x128xi1>, vector<1x128xf32>
      %cst_43 = arith.constant 0xFF800000 : f32
      %67 = vector.broadcast %cst_43 : f32 to vector<1x128xf32>
      %68 = arith.select %23, %12, %67 : vector<1x128xi1>, vector<1x128xf32>
      %cst_44 = arith.constant 0xFF800000 : f32
      %69 = vector.broadcast %cst_44 : f32 to vector<1x128xf32>
      %70 = arith.select %23, %13, %69 : vector<1x128xi1>, vector<1x128xf32>
      %c0_45 = arith.constant 0 : index
      %c0_46 = arith.constant 0 : index
      %71 = vector.load %arg10[%c0_45, %c0_46] : memref<1x128xf32, #tpu.memory_space<vmem>>, vector<1x128xf32>
      %cst_47 = arith.constant dense<0x7F800000> : vector<128xf32>
      %72 = vector.multi_reduction <minimumf>, %64, %cst_47 [0] : vector<1x128xf32> to vector<128xf32>
      %73 = vector.shape_cast %72 : vector<128xf32> to vector<1x128xf32>
      %74 = arith.minimumf %71, %73 : vector<1x128xf32>
      %c0_48 = arith.constant 0 : index
      %c0_49 = arith.constant 0 : index
      %75 = vector.load %arg10[%c0_48, %c0_49] : memref<1x128xf32, #tpu.memory_space<vmem>>, vector<1x128xf32>
      tpu.vector_store %arg10[%c0_48, %c0_49], %74 {strides = array<i32>} : memref<1x128xf32, #tpu.memory_space<vmem>>, vector<1x128xf32>,
      %c0_50 = arith.constant 0 : index
      %c0_51 = arith.constant 0 : index
      %76 = vector.load %arg11[%c0_50, %c0_51] : memref<1x128xf32, #tpu.memory_space<vmem>>, vector<1x128xf32>
      %cst_52 = arith.constant dense<0x7F800000> : vector<128xf32>
      %77 = vector.multi_reduction <minimumf>, %66, %cst_52 [0] : vector<1x128xf32> to vector<128xf32>
      %78 = vector.shape_cast %77 : vector<128xf32> to vector<1x128xf32>
      %79 = arith.minimumf %76, %78 : vector<1x128xf32>
      %c0_53 = arith.constant 0 : index
      %c0_54 = arith.constant 0 : index
      %80 = vector.load %arg11[%c0_53, %c0_54] : memref<1x128xf32, #tpu.memory_space<vmem>>, vector<1x128xf32>
      tpu.vector_store %arg11[%c0_53, %c0_54], %79 {strides = array<i32>} : memref<1x128xf32, #tpu.memory_space<vmem>>, vector<1x128xf32>,
      %c0_55 = arith.constant 0 : index
      %c0_56 = arith.constant 0 : index
      %81 = vector.load %arg12[%c0_55, %c0_56] : memref<1x128xf32, #tpu.memory_space<vmem>>, vector<1x128xf32>
      %cst_57 = arith.constant dense<0xFF800000> : vector<128xf32>
      %82 = vector.multi_reduction <maximumf>, %68, %cst_57 [0] : vector<1x128xf32> to vector<128xf32>
      %83 = vector.shape_cast %82 : vector<128xf32> to vector<1x128xf32>
      %84 = arith.maximumf %81, %83 : vector<1x128xf32>
      %c0_58 = arith.constant 0 : index
      %c0_59 = arith.constant 0 : index
      %85 = vector.load %arg12[%c0_58, %c0_59] : memref<1x128xf32, #tpu.memory_space<vmem>>, vector<1x128xf32>
      tpu.vector_store %arg12[%c0_58, %c0_59], %84 {strides = array<i32>} : memref<1x128xf32, #tpu.memory_space<vmem>>, vector<1x128xf32>,
      %c0_60 = arith.constant 0 : index
      %c0_61 = arith.constant 0 : index
      %86 = vector.load %arg13[%c0_60, %c0_61] : memref<1x128xf32, #tpu.memory_space<vmem>>, vector<1x128xf32>
      %cst_62 = arith.constant dense<0xFF800000> : vector<128xf32>
      %87 = vector.multi_reduction <maximumf>, %70, %cst_62 [0] : vector<1x128xf32> to vector<128xf32>
      %88 = vector.shape_cast %87 : vector<128xf32> to vector<1x128xf32>
      %89 = arith.maximumf %86, %88 : vector<1x128xf32>
      %c0_63 = arith.constant 0 : index
      %c0_64 = arith.constant 0 : index
      %90 = vector.load %arg13[%c0_63, %c0_64] : memref<1x128xf32, #tpu.memory_space<vmem>>, vector<1x128xf32>
      tpu.vector_store %arg13[%c0_63, %c0_64], %89 {strides = array<i32>} : memref<1x128xf32, #tpu.memory_space<vmem>>, vector<1x128xf32>,
    } else {
    }
    %c0_i32_5 = arith.constant 0 : i32
    %9 = arith.cmpi eq, %arg0, %c0_i32_5 : i32
    %10 = arith.extui %9 : i1 to i32
    %c0_i32_6 = arith.constant 0 : i32
    %11 = arith.cmpi ne, %10, %c0_i32_6 : i32
    scf.if %11 {
      %c0 = arith.constant 0 : index
      %c0_7 = arith.constant 0 : index
      %12 = vector.load %arg4[%c0, %c0_7] : memref<1x128xf32, #tpu.memory_space<vmem>>, vector<1x128xf32>
      %13 = vector.shape_cast %12 : vector<1x128xf32> to vector<1x1x128xf32>
      %cst = arith.constant dense<0.000000e+00> : vector<1xf32>
      %14 = vector.multi_reduction <add>, %13, %cst [1, 2] : vector<1x1x128xf32> to vector<1xf32>
      %15 = vector.shape_cast %14 : vector<1xf32> to vector<1x1x1xf32>
      %16 = vector.extract %15[0, 0, 0] : f32 from vector<1x1x1xf32>
      %c0_8 = arith.constant 0 : index
      %17 = memref.load %arg3[%c0_8] : memref<10xf32, #tpu.memory_space<smem>>
      memref.store %16, %arg3[%c0_8] : memref<10xf32, #tpu.memory_space<smem>>
      %c0_9 = arith.constant 0 : index
      %c0_10 = arith.constant 0 : index
      %18 = vector.load %arg5[%c0_9, %c0_10] : memref<1x128xf32, #tpu.memory_space<vmem>>, vector<1x128xf32>
      %19 = vector.shape_cast %18 : vector<1x128xf32> to vector<1x1x128xf32>
      %cst_11 = arith.constant dense<0.000000e+00> : vector<1xf32>
      %20 = vector.multi_reduction <add>, %19, %cst_11 [1, 2] : vector<1x1x128xf32> to vector<1xf32>
      %21 = vector.shape_cast %20 : vector<1xf32> to vector<1x1x1xf32>
      %22 = vector.extract %21[0, 0, 0] : f32 from vector<1x1x1xf32>
      %c1 = arith.constant 1 : index
      %23 = memref.load %arg3[%c1] : memref<10xf32, #tpu.memory_space<smem>>
      memref.store %22, %arg3[%c1] : memref<10xf32, #tpu.memory_space<smem>>
      %c0_12 = arith.constant 0 : index
      %c0_13 = arith.constant 0 : index
      %24 = vector.load %arg6[%c0_12, %c0_13] : memref<1x128xf32, #tpu.memory_space<vmem>>, vector<1x128xf32>
      %25 = vector.shape_cast %24 : vector<1x128xf32> to vector<1x1x128xf32>
      %cst_14 = arith.constant dense<0.000000e+00> : vector<1xf32>
      %26 = vector.multi_reduction <add>, %25, %cst_14 [1, 2] : vector<1x1x128xf32> to vector<1xf32>
      %27 = vector.shape_cast %26 : vector<1xf32> to vector<1x1x1xf32>
      %28 = vector.extract %27[0, 0, 0] : f32 from vector<1x1x1xf32>
      %c2 = arith.constant 2 : index
      %29 = memref.load %arg3[%c2] : memref<10xf32, #tpu.memory_space<smem>>
      memref.store %28, %arg3[%c2] : memref<10xf32, #tpu.memory_space<smem>>
      %c0_15 = arith.constant 0 : index
      %c0_16 = arith.constant 0 : index
      %30 = vector.load %arg7[%c0_15, %c0_16] : memref<1x128xf32, #tpu.memory_space<vmem>>, vector<1x128xf32>
      %31 = vector.shape_cast %30 : vector<1x128xf32> to vector<1x1x128xf32>
      %cst_17 = arith.constant dense<0.000000e+00> : vector<1xf32>
      %32 = vector.multi_reduction <add>, %31, %cst_17 [1, 2] : vector<1x1x128xf32> to vector<1xf32>
      %33 = vector.shape_cast %32 : vector<1xf32> to vector<1x1x1xf32>
      %34 = vector.extract %33[0, 0, 0] : f32 from vector<1x1x1xf32>
      %c3 = arith.constant 3 : index
      %35 = memref.load %arg3[%c3] : memref<10xf32, #tpu.memory_space<smem>>
      memref.store %34, %arg3[%c3] : memref<10xf32, #tpu.memory_space<smem>>
      %c0_18 = arith.constant 0 : index
      %c0_19 = arith.constant 0 : index
      %36 = vector.load %arg8[%c0_18, %c0_19] : memref<1x128xf32, #tpu.memory_space<vmem>>, vector<1x128xf32>
      %37 = vector.shape_cast %36 : vector<1x128xf32> to vector<1x1x128xf32>
      %cst_20 = arith.constant dense<0.000000e+00> : vector<1xf32>
      %38 = vector.multi_reduction <add>, %37, %cst_20 [1, 2] : vector<1x1x128xf32> to vector<1xf32>
      %39 = vector.shape_cast %38 : vector<1xf32> to vector<1x1x1xf32>
      %40 = vector.extract %39[0, 0, 0] : f32 from vector<1x1x1xf32>
      %c4 = arith.constant 4 : index
      %41 = memref.load %arg3[%c4] : memref<10xf32, #tpu.memory_space<smem>>
      memref.store %40, %arg3[%c4] : memref<10xf32, #tpu.memory_space<smem>>
      %c0_21 = arith.constant 0 : index
      %c0_22 = arith.constant 0 : index
      %42 = vector.load %arg9[%c0_21, %c0_22] : memref<1x128xf32, #tpu.memory_space<vmem>>, vector<1x128xf32>
      %43 = vector.shape_cast %42 : vector<1x128xf32> to vector<1x1x128xf32>
      %cst_23 = arith.constant dense<0.000000e+00> : vector<1xf32>
      %44 = vector.multi_reduction <add>, %43, %cst_23 [1, 2] : vector<1x1x128xf32> to vector<1xf32>
      %45 = vector.shape_cast %44 : vector<1xf32> to vector<1x1x1xf32>
      %46 = vector.extract %45[0, 0, 0] : f32 from vector<1x1x1xf32>
      %c5 = arith.constant 5 : index
      %47 = memref.load %arg3[%c5] : memref<10xf32, #tpu.memory_space<smem>>
      memref.store %46, %arg3[%c5] : memref<10xf32, #tpu.memory_space<smem>>
      %c0_24 = arith.constant 0 : index
      %c0_25 = arith.constant 0 : index
      %48 = vector.load %arg10[%c0_24, %c0_25] : memref<1x128xf32, #tpu.memory_space<vmem>>, vector<1x128xf32>
      %49 = vector.shape_cast %48 : vector<1x128xf32> to vector<1x1x128xf32>
      %cst_26 = arith.constant dense<0x7F800000> : vector<1xf32>
      %50 = vector.multi_reduction <minimumf>, %49, %cst_26 [1, 2] : vector<1x1x128xf32> to vector<1xf32>
      %51 = vector.shape_cast %50 : vector<1xf32> to vector<1x1x1xf32>
      %52 = vector.extract %51[0, 0, 0] : f32 from vector<1x1x1xf32>
      %c6 = arith.constant 6 : index
      %53 = memref.load %arg3[%c6] : memref<10xf32, #tpu.memory_space<smem>>
      memref.store %52, %arg3[%c6] : memref<10xf32, #tpu.memory_space<smem>>
      %c0_27 = arith.constant 0 : index
      %c0_28 = arith.constant 0 : index
      %54 = vector.load %arg11[%c0_27, %c0_28] : memref<1x128xf32, #tpu.memory_space<vmem>>, vector<1x128xf32>
      %55 = vector.shape_cast %54 : vector<1x128xf32> to vector<1x1x128xf32>
      %cst_29 = arith.constant dense<0x7F800000> : vector<1xf32>
      %56 = vector.multi_reduction <minimumf>, %55, %cst_29 [1, 2] : vector<1x1x128xf32> to vector<1xf32>
      %57 = vector.shape_cast %56 : vector<1xf32> to vector<1x1x1xf32>
      %58 = vector.extract %57[0, 0, 0] : f32 from vector<1x1x1xf32>
      %c7 = arith.constant 7 : index
      %59 = memref.load %arg3[%c7] : memref<10xf32, #tpu.memory_space<smem>>
      memref.store %58, %arg3[%c7] : memref<10xf32, #tpu.memory_space<smem>>
      %c0_30 = arith.constant 0 : index
      %c0_31 = arith.constant 0 : index
      %60 = vector.load %arg12[%c0_30, %c0_31] : memref<1x128xf32, #tpu.memory_space<vmem>>, vector<1x128xf32>
      %61 = vector.shape_cast %60 : vector<1x128xf32> to vector<1x1x128xf32>
      %cst_32 = arith.constant dense<0xFF800000> : vector<1xf32>
      %62 = vector.multi_reduction <maximumf>, %61, %cst_32 [1, 2] : vector<1x1x128xf32> to vector<1xf32>
      %63 = vector.shape_cast %62 : vector<1xf32> to vector<1x1x1xf32>
      %64 = vector.extract %63[0, 0, 0] : f32 from vector<1x1x1xf32>
      %c8 = arith.constant 8 : index
      %65 = memref.load %arg3[%c8] : memref<10xf32, #tpu.memory_space<smem>>
      memref.store %64, %arg3[%c8] : memref<10xf32, #tpu.memory_space<smem>>
      %c0_33 = arith.constant 0 : index
      %c0_34 = arith.constant 0 : index
      %66 = vector.load %arg13[%c0_33, %c0_34] : memref<1x128xf32, #tpu.memory_space<vmem>>, vector<1x128xf32>
      %67 = vector.shape_cast %66 : vector<1x128xf32> to vector<1x1x128xf32>
      %cst_35 = arith.constant dense<0xFF800000> : vector<1xf32>
      %68 = vector.multi_reduction <maximumf>, %67, %cst_35 [1, 2] : vector<1x1x128xf32> to vector<1xf32>
      %69 = vector.shape_cast %68 : vector<1xf32> to vector<1x1x1xf32>
      %70 = vector.extract %69[0, 0, 0] : f32 from vector<1x1x1xf32>
      %c9 = arith.constant 9 : index
      %71 = memref.load %arg3[%c9] : memref<10xf32, #tpu.memory_space<smem>>
      memref.store %70, %arg3[%c9] : memref<10xf32, #tpu.memory_space<smem>>
    } else {
    }
    return
  }
  func.func @transform_0(%arg0: i32) -> (i32, i32) {
    %c0_i32 = arith.constant 0 : i32
    %c0_i32_0 = arith.constant 0 : i32
    return %arg0, %c0_i32 : i32, i32
  }
  func.func @transform_1(%arg0: i32) -> (i32, i32) {
    %c0_i32 = arith.constant 0 : i32
    %c0_i32_0 = arith.constant 0 : i32
    return %arg0, %c0_i32 : i32, i32
  }
  func.func @transform_2(%arg0: i32) -> i32 {
    %c0_i32 = arith.constant 0 : i32
    %c0_i32_0 = arith.constant 0 : i32
    return %c0_i32 : i32
  }
}

</mosaic_0001>

<llo_original>
// kernel: value_loss.1
$region0: #{value_loss.1}
  #allocation0 [shape = 'u32[]', space=smem, size = 0x4, offset = 0x4, fixed_abs, tag = 'smem constant byte address 0x4 - core index']
  #allocation1 [shape = 'u32[144,128]{1,0:T(1,128)}', space=vmem, size = 0x12000, scoped, tag = 'internal scratch']
  #allocation2 [shape = 'f32[1,128]{1,0:T(1,128)}', space=vmem, size = 0x200, scoped, tag = 'scratch operand']
  #allocation3 [shape = 'f32[1,128]{1,0:T(1,128)}', space=vmem, size = 0x200, scoped, tag = 'scratch operand']
  #allocation4 [shape = 'f32[1,128]{1,0:T(1,128)}', space=vmem, size = 0x200, scoped, tag = 'scratch operand']
  #allocation5 [shape = 'f32[1,128]{1,0:T(1,128)}', space=vmem, size = 0x200, scoped, tag = 'scratch operand']
  #allocation6 [shape = 'f32[1,128]{1,0:T(1,128)}', space=vmem, size = 0x200, scoped, tag = 'scratch operand']
  #allocation7 [shape = 'f32[1,128]{1,0:T(1,128)}', space=vmem, size = 0x200, scoped, tag = 'scratch operand']
  #allocation8 [shape = 'f32[1,128]{1,0:T(1,128)}', space=vmem, size = 0x200, scoped, tag = 'scratch operand']
  #allocation9 [shape = 'f32[1,128]{1,0:T(1,128)}', space=vmem, size = 0x200, scoped, tag = 'scratch operand']
  #allocation10 [shape = 'f32[1,128]{1,0:T(1,128)}', space=vmem, size = 0x200, scoped, tag = 'scratch operand']
  #allocation11 [shape = 'f32[1,128]{1,0:T(1,128)}', space=vmem, size = 0x200, scoped, tag = 'scratch operand']
  %s0 = inlined_call_operand.vmem [shape: f32[1,128], index: 0, kind: input, shape index: {}]
  %s1 = inlined_call_operand.vmem [shape: f32[1,128], index: 1, kind: input, shape index: {}]
  %s2 = inlined_call_operand.vmem [shape: f32[10], index: 2, kind: output, shape index: {}]
  %s3 = sld [smem:[#allocation0]]
  $region30: #{value_loss.1} parent=0
    _
  %s5 = ssub.s32 1, %s3
  %s6 = scalar_select 0, %s5, %s3
  $region1: #{value_loss.1} parent=0
    #allocation12 [shape = 'u8[512]{0}', space=smem, size = 0x200, scoped, tag = 'output window, operand 0, single buffered']
    #allocation13 [shape = 's32[1]{0}', space=sflag, size = 0x4, scoped, tag = 'scoped memory for value_loss.1']
    %7 = vsyncpa [#allocation13], 0
    // Predicated region
    $region2: #{value_loss.1} parent=1 // pred_check
      _
    $region3: #{value_loss.1} parent=1 // pred_check_branch
      %9 = sbr.rel (0) target = $region5
    $region4: #{value_loss.1} parent=1 // pred_region
      _
    $region5: #{value_loss.1} parent=1 // pred_fallthru
      _
    // Predicated region
    $region6: #{value_loss.1} parent=1 // pred_check
      _
    $region7: #{value_loss.1} parent=1 // pred_check_branch
      %11 = sbr.rel (0) target = $region9
    $region8: #{value_loss.1} parent=1 // pred_region
      _
    $region9: #{value_loss.1} parent=1 // pred_fallthru
      _
    %p12 = scmp.eq.s32.totalorder 0, 0
    // Predicated region
    $region10: #{value_loss.1} parent=1 // pred_check
      %p13 = pneg %p12
    $region11: #{value_loss.1} parent=1 // pred_check_branch
      %15 = sbr.rel (%p13) target = $region13
    $region12: #{value_loss.1} parent=1 // pred_region
      %16 = vst [vmem:[#allocation2] sm:$0x1] 0.0
      %17 = vst [vmem:[#allocation3] sm:$0x1] 0.0
      %18 = vst [vmem:[#allocation4] sm:$0x1] 0.0
      %19 = vst [vmem:[#allocation5] sm:$0x1] 0.0
      %20 = vst [vmem:[#allocation6] sm:$0x1] 0.0
      %21 = vst [vmem:[#allocation7] sm:$0x1] 0.0
      %22 = vst [vmem:[#allocation8] sm:$0x1] inf
      %23 = vst [vmem:[#allocation9] sm:$0x1] inf
      %24 = vst [vmem:[#allocation10] sm:$0x1] -inf
      %25 = vst [vmem:[#allocation11] sm:$0x1] -inf
    $region13: #{value_loss.1} parent=1 // pred_fallthru
      _
    %p26 = scmp.ne.s32.totalorder 0, 0
    // Predicated region
    $region14: #{value_loss.1} parent=1 // pred_check
      %p27 = pneg %p26
    $region15: #{value_loss.1} parent=1 // pred_check_branch
      %29 = sbr.rel (%p27) target = $region17
    $region16: #{value_loss.1} parent=1 // pred_region
      %v30 = vld [vmem:[%s0] sm:$0x1]
      %v31 = vld [vmem:[%s1] sm:$0x1]
      %v32 = vsub.f32 %v30, %v31
      %v33 = vld [vmem:[#allocation2] sm:$0x1]
      %v34 = vmul.f32 %v32, %v32
      %v35 = vadd.f32 %v34, 0.0
      %v36 = vadd.f32 %v33, %v35
      %37 = vst [vmem:[#allocation2] sm:$0x1] %v36
      %v38 = vld [vmem:[#allocation3] sm:$0x1]
      %v39 = vadd.f32 %v30, 0.0
      %v40 = vadd.f32 %v38, %v39
      %41 = vst [vmem:[#allocation3] sm:$0x1] %v40
      %v42 = vld [vmem:[#allocation4] sm:$0x1]
      %v43 = vadd.f32 %v31, 0.0
      %v44 = vadd.f32 %v42, %v43
      %45 = vst [vmem:[#allocation4] sm:$0x1] %v44
      %v46 = vld [vmem:[#allocation5] sm:$0x1]
      %v47 = vmul.f32 %v30, %v30
      %v48 = vadd.f32 %v47, 0.0
      %v49 = vadd.f32 %v46, %v48
      %50 = vst [vmem:[#allocation5] sm:$0x1] %v49
      %v51 = vld [vmem:[#allocation6] sm:$0x1]
      %v52 = vmul.f32 %v31, %v31
      %v53 = vadd.f32 %v52, 0.0
      %v54 = vadd.f32 %v51, %v53
      %55 = vst [vmem:[#allocation6] sm:$0x1] %v54
      %v56 = vld [vmem:[#allocation7] sm:$0x1]
      %v57 = vmul.f32 %v30, %v31
      %v58 = vadd.f32 %v57, 0.0
      %v59 = vadd.f32 %v56, %v58
      %60 = vst [vmem:[#allocation7] sm:$0x1] %v59
      %v61 = vld [vmem:[#allocation8] sm:$0x1]
      %v62 = vmin.f32 %v61, %v30
      %63 = vst [vmem:[#allocation8] sm:$0x1] %v62
      %v64 = vld [vmem:[#allocation9] sm:$0x1]
      %v65 = vmin.f32 %v64, %v31
      %66 = vst [vmem:[#allocation9] sm:$0x1] %v65
      %v67 = vld [vmem:[#allocation10] sm:$0x1]
      %v68 = vmax.f32 %v67, %v30
      %69 = vst [vmem:[#allocation10] sm:$0x1] %v68
      %v70 = vld [vmem:[#allocation11] sm:$0x1]
      %v71 = vmax.f32 %v70, %v31
      %72 = vst [vmem:[#allocation11] sm:$0x1] %v71
    $region17: #{value_loss.1} parent=1 // pred_fallthru
      _
    // Predicated region
    $region18: #{value_loss.1} parent=1 // pred_check
      %p73 = pneg %p12
    $region19: #{value_loss.1} parent=1 // pred_check_branch
      %75 = sbr.rel (%p73) target = $region21
    $region20: #{value_loss.1} parent=1 // pred_region
      %v76 = vld [vmem:[%s0] sm:$0x1]
      %v77 = vld [vmem:[%s1] sm:$0x1]
      %v78 = vlaneseq
      %v79 = vshrl.u32 %v78, 7
      %v80 = vlaneseq
      %v81 = vand.u32 %v80, 127
      %v82 = vstv 0
      %v83 = vadd.s32 %v82, %v79
      %v84 = vmul.u32 %v83, 128
      %v85 = vadd.s32 %v84, %v81
      %vm86 = vcmp.lt.s32.totalorder %v85, 8
      %v87 = vsel %vm86, %v76, 0.0
      %v88 = vsel %vm86, %v77, 0.0
      %v89 = vsub.f32 %v87, %v88
      %v90 = vld [vmem:[#allocation2] sm:$0x1]
      %v91 = vmul.f32 %v89, %v89
      %v92 = vadd.f32 %v91, 0.0
      %v93 = vadd.f32 %v90, %v92
      %94 = vst [vmem:[#allocation2] sm:$0x1] %v93
      %v95 = vld [vmem:[#allocation3] sm:$0x1]
      %v96 = vadd.f32 %v87, 0.0
      %v97 = vadd.f32 %v95, %v96
      %98 = vst [vmem:[#allocation3] sm:$0x1] %v97
      %v99 = vld [vmem:[#allocation4] sm:$0x1]
      %v100 = vadd.f32 %v88, 0.0
      %v101 = vadd.f32 %v99, %v100
      %102 = vst [vmem:[#allocation4] sm:$0x1] %v101
      %v103 = vld [vmem:[#allocation5] sm:$0x1]
      %v104 = vmul.f32 %v87, %v87
      %v105 = vadd.f32 %v104, 0.0
      %v106 = vadd.f32 %v103, %v105
      %107 = vst [vmem:[#allocation5] sm:$0x1] %v106
      %v108 = vld [vmem:[#allocation6] sm:$0x1]
      %v109 = vmul.f32 %v88, %v88
      %v110 = vadd.f32 %v109, 0.0
      %v111 = vadd.f32 %v108, %v110
      %112 = vst [vmem:[#allocation6] sm:$0x1] %v111
      %v113 = vld [vmem:[#allocation7] sm:$0x1]
      %v114 = vmul.f32 %v87, %v88
      %v115 = vadd.f32 %v114, 0.0
      %v116 = vadd.f32 %v113, %v115
      %117 = vst [vmem:[#allocation7] sm:$0x1] %v116
      %v118 = vsel %vm86, %v76, inf
      %v119 = vsel %vm86, %v77, inf
      %v120 = vsel %vm86, %v76, -inf
      %v121 = vsel %vm86, %v77, -inf
      %v122 = vld [vmem:[#allocation8] sm:$0x1]
      %v123 = vmin.f32 %v122, %v118
      %124 = vst [vmem:[#allocation8] sm:$0x1] %v123
      %v125 = vld [vmem:[#allocation9] sm:$0x1]
      %v126 = vmin.f32 %v125, %v119
      %127 = vst [vmem:[#allocation9] sm:$0x1] %v126
      %v128 = vld [vmem:[#allocation10] sm:$0x1]
      %v129 = vmax.f32 %v128, %v120
      %130 = vst [vmem:[#allocation10] sm:$0x1] %v129
      %v131 = vld [vmem:[#allocation11] sm:$0x1]
      %v132 = vmax.f32 %v131, %v121
      %133 = vst [vmem:[#allocation11] sm:$0x1] %v132
      %v134 = vld [vmem:[#allocation2] sm:$0x1]
      %vm135 = vcmask 1040384
      %v136 = vsel %vm135, %v134, 0.0
      %137 = vadd.xlane.f32.xlu0 %v136
      %v138 = vpop.xlane.xlu0 %137
      %v139 = vrot.slane %v138, 4
      %v140 = vadd.f32 %v138, %v139
      %v141 = vrot.slane %v140, 2
      %v142 = vadd.f32 %v140, %v141
      %v143 = vrot.slane %v142, 1
      %v144 = vadd.f32 %v142, %v143
      %s145 = vtos %v144
      %s146 = scalar_lea.smem [#allocation12], 0
      %147 = sst [smem:[%s146]] %s145
      %v148 = vld [vmem:[#allocation3] sm:$0x1]
      %v149 = vsel %vm135, %v148, 0.0
      %150 = vadd.xlane.f32.xlu0 %v149
      %v151 = vpop.xlane.xlu0 %150
      %v152 = vrot.slane %v151, 4
      %v153 = vadd.f32 %v151, %v152
      %v154 = vrot.slane %v153, 2
      %v155 = vadd.f32 %v153, %v154
      %v156 = vrot.slane %v155, 1
      %v157 = vadd.f32 %v155, %v156
      %s158 = vtos %v157
      %s159 = scalar_lea.smem [#allocation12], 1
      %160 = sst [smem:[%s159]] %s158
      %v161 = vld [vmem:[#allocation4] sm:$0x1]
      %v162 = vsel %vm135, %v161, 0.0
      %163 = vadd.xlane.f32.xlu0 %v162
      %v164 = vpop.xlane.xlu0 %163
      %v165 = vrot.slane %v164, 4
      %v166 = vadd.f32 %v164, %v165
      %v167 = vrot.slane %v166, 2
      %v168 = vadd.f32 %v166, %v167
      %v169 = vrot.slane %v168, 1
      %v170 = vadd.f32 %v168, %v169
      %s171 = vtos %v170
      %s172 = scalar_lea.smem [#allocation12], 2
      %173 = sst [smem:[%s172]] %s171
      %v174 = vld [vmem:[#allocation5] sm:$0x1]
      %v175 = vsel %vm135, %v174, 0.0
      %176 = vadd.xlane.f32.xlu0 %v175
      %v177 = vpop.xlane.xlu0 %176
      %v178 = vrot.slane %v177, 4
      %v179 = vadd.f32 %v177, %v178
      %v180 = vrot.slane %v179, 2
      %v181 = vadd.f32 %v179, %v180
      %v182 = vrot.slane %v181, 1
      %v183 = vadd.f32 %v181, %v182
      %s184 = vtos %v183
      %s185 = scalar_lea.smem [#allocation12], 3
      %186 = sst [smem:[%s185]] %s184
      %v187 = vld [vmem:[#allocation6] sm:$0x1]
      %v188 = vsel %vm135, %v187, 0.0
      %189 = vadd.xlane.f32.xlu0 %v188
      %v190 = vpop.xlane.xlu0 %189
      %v191 = vrot.slane %v190, 4
      %v192 = vadd.f32 %v190, %v191
      %v193 = vrot.slane %v192, 2
      %v194 = vadd.f32 %v192, %v193
      %v195 = vrot.slane %v194, 1
      %v196 = vadd.f32 %v194, %v195
      %s197 = vtos %v196
      %s198 = scalar_lea.smem [#allocation12], 4
      %199 = sst [smem:[%s198]] %s197
      %v200 = vld [vmem:[#allocation7] sm:$0x1]
      %v201 = vsel %vm135, %v200, 0.0
      %202 = vadd.xlane.f32.xlu0 %v201
      %v203 = vpop.xlane.xlu0 %202
      %v204 = vrot.slane %v203, 4
      %v205 = vadd.f32 %v203, %v204
      %v206 = vrot.slane %v205, 2
      %v207 = vadd.f32 %v205, %v206
      %v208 = vrot.slane %v207, 1
      %v209 = vadd.f32 %v207, %v208
      %s210 = vtos %v209
      %s211 = scalar_lea.smem [#allocation12], 5
      %212 = sst [smem:[%s211]] %s210
      %v213 = vld [vmem:[#allocation8] sm:$0x1]
      %v214 = vsel %vm135, %v213, inf
      %215 = vmin.xlane.f32.xlu0 %v214
      %v216 = vpop.xlane.xlu0 %215
      %v217 = vrot.slane %v216, 4
      %v218 = vmin.f32 %v216, %v217
      %v219 = vrot.slane %v218, 2
      %v220 = vmin.f32 %v218, %v219
      %v221 = vrot.slane %v220, 1
      %v222 = vmin.f32 %v220, %v221
      %s223 = vtos %v222
      %s224 = scalar_lea.smem [#allocation12], 6
      %225 = sst [smem:[%s224]] %s223
      %v226 = vld [vmem:[#allocation9] sm:$0x1]
      %v227 = vsel %vm135, %v226, inf
      %228 = vmin.xlane.f32.xlu0 %v227
      %v229 = vpop.xlane.xlu0 %228
      %v230 = vrot.slane %v229, 4
      %v231 = vmin.f32 %v229, %v230
      %v232 = vrot.slane %v231, 2
      %v233 = vmin.f32 %v231, %v232
      %v234 = vrot.slane %v233, 1
      %v235 = vmin.f32 %v233, %v234
      %s236 = vtos %v235
      %s237 = scalar_lea.smem [#allocation12], 7
      %238 = sst [smem:[%s237]] %s236
      %v239 = vld [vmem:[#allocation10] sm:$0x1]
      %v240 = vsel %vm135, %v239, -inf
      %241 = vmax.xlane.f32.xlu0 %v240
      %v242 = vpop.xlane.xlu0 %241
      %v243 = vrot.slane %v242, 4
      %v244 = vmax.f32 %v242, %v243
      %v245 = vrot.slane %v244, 2
      %v246 = vmax.f32 %v244, %v245
      %v247 = vrot.slane %v246, 1
      %v248 = vmax.f32 %v246, %v247
      %s249 = vtos %v248
      %s250 = scalar_lea.smem [#allocation12], 8
      %251 = sst [smem:[%s250]] %s249
      %v252 = vld [vmem:[#allocation11] sm:$0x1]
      %v253 = vsel %vm135, %v252, -inf
      %254 = vmax.xlane.f32.xlu0 %v253
      %v255 = vpop.xlane.xlu0 %254
      %v256 = vrot.slane %v255, 4
      %v257 = vmax.f32 %v255, %v256
      %v258 = vrot.slane %v257, 2
      %v259 = vmax.f32 %v257, %v258
      %v260 = vrot.slane %v259, 1
      %v261 = vmax.f32 %v259, %v260
      %s262 = vtos %v261
      %s263 = scalar_lea.smem [#allocation12], 9
      %264 = sst [smem:[%s263]] %s262
    $region21: #{value_loss.1} parent=1 // pred_fallthru
      _
    // Predicated region
    $region22: #{value_loss.1} parent=1 // pred_check
      _
    $region23: #{value_loss.1} parent=1 // pred_check_branch
      %266 = sbr.rel (0) target = $region25
    $region24: #{value_loss.1} parent=1 // pred_region
      %s268 = ssub.s32 16, 16
      %269 = vsyncadd [#allocation13], %s268
      %s271 = sshll.u32 %s2, 4
      %s272 = int_to_ptr.vmem [resolvable:$true] %s271
      %274 = dma.smem_to_vmem [#allocation12], 16, %s272, [#allocation13]
    $region25: #{value_loss.1} parent=1 // pred_fallthru
      _
    // Predicated region
    $region26: #{value_loss.1} parent=1 // pred_check
      _
    $region27: #{value_loss.1} parent=1 // pred_check_branch
      %276 = sbr.rel (0) target = $region29
    $region28: #{value_loss.1} parent=1 // pred_region
      %277 = dma.done [#allocation13], 16
    $region29: #{value_loss.1} parent=1 // pred_fallthru
      _
    %278 = sfence
    %279 = vsyncpa [#allocation13], 1

</llo_original>
